<compile_context>
chip_gen: v5e
topology: v5e:2x2
jax: 0.10.0
libtpu: 0.0.40
codegen_flags: <defaults>
</compile_context>

<pallas_src>
import functools

import jax
import jax.numpy as jnp
from jax import lax
from jax.experimental import pallas as pl
from jax.experimental.pallas import tpu as pltpu  # noqa: F401  (TPU backend)

# --- config (mirrors the torch `config` object) -----------------------------
EMBED = 32          # config.EMBED_SIZE
HEADS = 4           # config.NUM_HEADS
HIDDEN = 64         # config.HIDDEN_DIM
HEAD_DIM = EMBED // HEADS
LN_EPS = 1e-5       # PyTorch LayerNorm default
BATCH = 2
SEQ = 8


def _layernorm(x, g, b):
    mu = jnp.mean(x, axis=-1, keepdims=True)
    var = jnp.mean((x - mu) ** 2, axis=-1, keepdims=True)
    return (x - mu) * lax.rsqrt(var + LN_EPS) * g + b


def _gelu_exact(x):
    # nn.GELU() default is the exact (erf) variant
    return 0.5 * x * (1.0 + lax.erf(x * jnp.float32(0.7071067811865476)))


def transformer_layer_kernel(x_ref, mask_ref, wqkv_ref, wo_ref, w1_ref, w2_ref,
                             bwide_ref, vecs_ref, o_ref, *,
                             batch, seq, heads, head_dim, hidden):
    embed = heads * head_dim
    x = x_ref[...]              # (B*S, E)   token-flattened activations
    mask = mask_ref[...]        # (B, S)     1.0 = attend

    wqkv = wqkv_ref[...]        # (E, 3E)    [Wq | Wk | Wv]  (stored as (in, out))
    wo = wo_ref[...]            # (E, E)
    w1 = w1_ref[...]            # (E, HIDDEN)
    w2 = w2_ref[...]            # (HIDDEN, E)
    bwide = bwide_ref[...]      # (2, max(3E, HIDDEN)); row0=[bq|bk|bv], row1=b1(padded)
    vecs = vecs_ref[...]        # (6, E): bo, ln1_g, ln1_b, b2, ln2_g, ln2_b

    bqkv = bwide[0:1, :3 * embed]
    b1 = bwide[1:2, :hidden]
    bo, ln1g, ln1b = vecs[0:1], vecs[1:2], vecs[2:3]
    b2, ln2g, ln2b = vecs[3:4], vecs[4:5], vecs[5:6]

    # --- multi-head attention -------------------------------------------
    # fused QKV projection on the flattened (B*S, E) token matrix
    qkv = jnp.dot(x, wqkv, preferred_element_type=jnp.float32) + bqkv   # (B*S, 3E)
    qkv = qkv.reshape(batch, seq, 3 * embed)

    mask_bias = ((1.0 - mask) * -10000.0)[:, None, :]                   # (B, 1, S)
    scale = jnp.float32(1.0 / (head_dim ** 0.5))

    attn = jnp.zeros((batch * seq, embed), jnp.float32)
    for h in range(heads):          # static loop; each iteration is batched over B
        q_h = qkv[:, :, h * head_dim:(h + 1) * head_dim]                        # (B,S,hd)
        k_h = qkv[:, :, embed + h * head_dim:embed + (h + 1) * head_dim]
        v_h = qkv[:, :, 2 * embed + h * head_dim:2 * embed + (h + 1) * head_dim]

        s = jnp.einsum("bqd,bkd->bqk", q_h, k_h,
                       preferred_element_type=jnp.float32) * scale + mask_bias  # (B,S,S)
        m = jnp.max(s, axis=-1, keepdims=True)
        p = jnp.exp(s - m)
        p = p * pl.reciprocal(jnp.sum(p, axis=-1, keepdims=True), approx=True)
        # dropout(attention_probs) is identity at inference
        ctx_h = jnp.einsum("bqk,bkd->bqd", p, v_h,
                           preferred_element_type=jnp.float32)                  # (B,S,hd)
        # fold this head's context straight into the output projection:
        #   concat_h(ctx_h) @ Wo  ==  sum_h ctx_h @ Wo[h*hd:(h+1)*hd, :]
        attn = attn + jnp.dot(ctx_h.reshape(batch * seq, head_dim),
                              wo[h * head_dim:(h + 1) * head_dim, :],
                              preferred_element_type=jnp.float32)
    attn = attn + bo
    # dropout(attention_output) is identity at inference
    h1 = _layernorm(attn + x, ln1g, ln1b)

    # --- feed-forward -----------------------------------------------------
    ff = jnp.dot(h1, w1, preferred_element_type=jnp.float32) + b1
    ff = _gelu_exact(ff)
    ff = jnp.dot(ff, w2, preferred_element_type=jnp.float32) + b2
    # dropout(ff) is identity at inference
    o_ref[...] = _layernorm(h1 + ff, ln2g, ln2b)


@jax.jit
def transformer_layer(x, mask, packed):
    B, S, E = x.shape
    head_dim = E // HEADS
    hidden = packed["w1"].shape[1]

    kernel = functools.partial(
        transformer_layer_kernel,
        batch=B, seq=S, heads=HEADS, head_dim=head_dim, hidden=hidden)

    out = pl.pallas_call(
        kernel,
        out_shape=jax.ShapeDtypeStruct((B * S, E), jnp.float32),
        # No grid: single invocation, all operands whole-array resident in VMEM.
        # TODO(synk): on v7x (2 TensorCores) a grid=(B,) "parallel" batch split
        # could be re-introduced; at this size dispatch overhead roughly cancels it.
    )(
        x.reshape(B * S, E).astype(jnp.float32),
        mask.reshape(B, S).astype(jnp.float32),
        packed["wqkv"], packed["wo"], packed["w1"], packed["w2"],
        packed["bwide"], packed["vecs"],
    )
    return out.reshape(B, S, E)


def init_params(key):
    """Raw params, linear weights stored as (in, out) == torch_weight.T."""
    ks = jax.random.split(key, 16)
    s = 0.02
    n = lambda k, shp: jax.random.normal(k, shp, jnp.float32) * s
    return {
        "wq": n(ks[0], (EMBED, EMBED)), "bq": n(ks[1], (EMBED,)),
        "wk": n(ks[2], (EMBED, EMBED)), "bk": n(ks[3], (EMBED,)),
        "wv": n(ks[4], (EMBED, EMBED)), "bv": n(ks[5], (EMBED,)),
        "wo": n(ks[6], (EMBED, EMBED)), "bo": n(ks[7], (EMBED,)),
        "ln1g": 1.0 + n(ks[8], (EMBED,)), "ln1b": n(ks[9], (EMBED,)),
        "w1": n(ks[10], (EMBED, HIDDEN)), "b1": n(ks[11], (HIDDEN,)),
        "w2": n(ks[12], (HIDDEN, EMBED)), "b2": n(ks[13], (EMBED,)),
        "ln2g": 1.0 + n(ks[14], (EMBED,)), "ln2b": n(ks[15], (EMBED,)),
    }


def pack_params(p):
    """Pack the 16 small tensors into 6 kernel inputs (fewer, fatter DMAs)."""
    width = max(3 * EMBED, HIDDEN)
    bqkv = jnp.concatenate([p["bq"], p["bk"], p["bv"]])                 # (3E,)
    row0 = jnp.zeros((width,), jnp.float32).at[:3 * EMBED].set(bqkv)
    row1 = jnp.zeros((width,), jnp.float32).at[:HIDDEN].set(p["b1"])
    return {
        "wqkv": jnp.concatenate([p["wq"], p["wk"], p["wv"]], axis=1),   # (E, 3E)
        "wo": p["wo"],
        "w1": p["w1"],
        "w2": p["w2"],
        "bwide": jnp.stack([row0, row1]),                               # (2, width)
        "vecs": jnp.stack([p["bo"], p["ln1g"], p["ln1b"],
                           p["b2"], p["ln2g"], p["ln2b"]]),             # (6, E)
    }


def reference_transformer(x, mask, p):
    """Pure-JAX reference matching the PyTorch forward (eval mode)."""
    B, S, E = x.shape

    def ln(v, g, b):
        mu = v.mean(-1, keepdims=True)
        var = ((v - mu) ** 2).mean(-1, keepdims=True)
        return (v - mu) / jnp.sqrt(var + LN_EPS) * g + b

    def split(v):  # (B,S,E) -> (B,H,S,hd)
        return v.reshape(B, S, HEADS, HEAD_DIM).transpose(0, 2, 1, 3)

    q = split(x @ p["wq"] + p["bq"])
    k = split(x @ p["wk"] + p["bk"])
    v = split(x @ p["wv"] + p["bv"])
    scores = jnp.einsum("bhqd,bhkd->bhqk", q, k) / jnp.sqrt(jnp.float32(HEAD_DIM))
    scores = scores + ((1.0 - mask) * -10000.0)[:, None, None, :]
    probs = jax.nn.softmax(scores, axis=-1)
    ctx = jnp.einsum("bhqk,bhkd->bhqd", probs, v)
    ctx = ctx.transpose(0, 2, 1, 3).reshape(B, S, E)
    attn = ctx @ p["wo"] + p["bo"]
    h1 = ln(attn + x, p["ln1g"], p["ln1b"])
    ff = h1 @ p["w1"] + p["b1"]
    ff = 0.5 * ff * (1.0 + lax.erf(ff / jnp.sqrt(2.0)))
    ff = ff @ p["w2"] + p["b2"]
    return ln(h1 + ff, p["ln2g"], p["ln2b"])


if __name__ == "__main__":
    key = jax.random.PRNGKey(0)
    kx, kp, km = jax.random.split(key, 3)
    x = jax.random.normal(kx, (BATCH, SEQ, EMBED), jnp.float32)
    # Partially-masked attention (1.0 = attend) to exercise the -10000 bias path.
    mask = (jax.random.uniform(km, (BATCH, SEQ)) > 0.2).astype(jnp.float32)
    mask = mask.at[:, 0].set(1.0)

    params = init_params(kp)
    packed = pack_params(params)

    out = jax.block_until_ready(transformer_layer(x, mask, packed))
    ref = reference_transformer(x, mask, params)

    assert out.shape == (BATCH, SEQ, EMBED)
    err = float(jnp.max(jnp.abs(out - ref)))
    # tolerance covers pl.reciprocal(approx=True) in the softmax normalization
    assert jnp.allclose(out, ref, atol=1e-3, rtol=1e-3), f"max abs err = {err}"

    # TODO(synk): dropout is treated as inference-mode identity (no RNG mask).
    print("KERNEL_OK")
</pallas_src>

<mosaic_0001>
module attributes {stable_mosaic.version = 11 : i64} {
  func.func @transformer_layer_kernel(%arg0: memref<16x32xf32, #tpu.memory_space<vmem>>, %arg1: memref<2x8xf32, #tpu.memory_space<vmem>>, %arg2: memref<32x96xf32, #tpu.memory_space<vmem>>, %arg3: memref<32x32xf32, #tpu.memory_space<vmem>>, %arg4: memref<32x64xf32, #tpu.memory_space<vmem>>, %arg5: memref<64x32xf32, #tpu.memory_space<vmem>>, %arg6: memref<2x96xf32, #tpu.memory_space<vmem>>, %arg7: memref<6x32xf32, #tpu.memory_space<vmem>>, %arg8: memref<16x32xf32, #tpu.memory_space<vmem>>) attributes {dimension_semantics = [], scalar_prefetch = 0 : i64, scratch_operands = 0 : i64, tpu.core_type = #tpu.core_type<tc>} {
    %c0 = arith.constant 0 : index
    %c0_0 = arith.constant 0 : index
    %0 = vector.load %arg0[%c0, %c0_0] : memref<16x32xf32, #tpu.memory_space<vmem>>, vector<16x32xf32>
    %c0_1 = arith.constant 0 : index
    %c0_2 = arith.constant 0 : index
    %1 = vector.load %arg1[%c0_1, %c0_2] : memref<2x8xf32, #tpu.memory_space<vmem>>, vector<2x8xf32>
    %c0_3 = arith.constant 0 : index
    %c0_4 = arith.constant 0 : index
    %2 = vector.load %arg2[%c0_3, %c0_4] : memref<32x96xf32, #tpu.memory_space<vmem>>, vector<32x96xf32>
    %c0_5 = arith.constant 0 : index
    %c0_6 = arith.constant 0 : index
    %3 = vector.load %arg3[%c0_5, %c0_6] : memref<32x32xf32, #tpu.memory_space<vmem>>, vector<32x32xf32>
    %c0_7 = arith.constant 0 : index
    %c0_8 = arith.constant 0 : index
    %4 = vector.load %arg4[%c0_7, %c0_8] : memref<32x64xf32, #tpu.memory_space<vmem>>, vector<32x64xf32>
    %c0_9 = arith.constant 0 : index
    %c0_10 = arith.constant 0 : index
    %5 = vector.load %arg5[%c0_9, %c0_10] : memref<64x32xf32, #tpu.memory_space<vmem>>, vector<64x32xf32>
    %c0_11 = arith.constant 0 : index
    %c0_12 = arith.constant 0 : index
    %6 = vector.load %arg6[%c0_11, %c0_12] : memref<2x96xf32, #tpu.memory_space<vmem>>, vector<2x96xf32>
    %c0_13 = arith.constant 0 : index
    %c0_14 = arith.constant 0 : index
    %7 = vector.load %arg7[%c0_13, %c0_14] : memref<6x32xf32, #tpu.memory_space<vmem>>, vector<6x32xf32>
    %8 = vector.extract_strided_slice %6 {offsets = [0, 0], sizes = [1, 96], strides = [1, 1]} : vector<2x96xf32> to vector<1x96xf32>
    %9 = vector.extract_strided_slice %6 {offsets = [1, 0], sizes = [1, 64], strides = [1, 1]} : vector<2x96xf32> to vector<1x64xf32>
    %10 = vector.extract_strided_slice %7 {offsets = [0, 0], sizes = [1, 32], strides = [1, 1]} : vector<6x32xf32> to vector<1x32xf32>
    %11 = vector.extract_strided_slice %7 {offsets = [1, 0], sizes = [1, 32], strides = [1, 1]} : vector<6x32xf32> to vector<1x32xf32>
    %12 = vector.extract_strided_slice %7 {offsets = [2, 0], sizes = [1, 32], strides = [1, 1]} : vector<6x32xf32> to vector<1x32xf32>
    %13 = vector.extract_strided_slice %7 {offsets = [3, 0], sizes = [1, 32], strides = [1, 1]} : vector<6x32xf32> to vector<1x32xf32>
    %14 = vector.extract_strided_slice %7 {offsets = [4, 0], sizes = [1, 32], strides = [1, 1]} : vector<6x32xf32> to vector<1x32xf32>
    %15 = vector.extract_strided_slice %7 {offsets = [5, 0], sizes = [1, 32], strides = [1, 1]} : vector<6x32xf32> to vector<1x32xf32>
    %cst = arith.constant dense<0.000000e+00> : vector<16x96xf32>
    %16 = tpu.matmul %0, %2, %cst {dimension_numbers = #tpu.dot_dimension_numbers<[1], [0], [0], [1], [0, 0, 1, 1], [], []>} : vector<16x32xf32>, vector<32x96xf32>, vector<16x96xf32> -> vector<16x96xf32>
    %17 = vector.broadcast %8 : vector<1x96xf32> to vector<16x96xf32>
    %18 = arith.addf %16, %17 : vector<16x96xf32>
    %19 = vector.shape_cast %18 : vector<16x96xf32> to vector<2x8x96xf32>
    %cst_15 = arith.constant 1.000000e+00 : f32
    %20 = vector.broadcast %cst_15 : f32 to vector<2x8xf32>
    %21 = arith.subf %20, %1 : vector<2x8xf32>
    %cst_16 = arith.constant -1.000000e+04 : f32
    %22 = vector.broadcast %cst_16 : f32 to vector<2x8xf32>
    %23 = arith.mulf %21, %22 : vector<2x8xf32>
    %24 = vector.shape_cast %23 : vector<2x8xf32> to vector<2x1x8xf32>
    %cst_17 = arith.constant 0.000000e+00 : f32
    %25 = vector.broadcast %cst_17 : f32 to vector<16x32xf32>
    %26 = vector.extract_strided_slice %19 {offsets = [0, 0, 0], sizes = [2, 8, 8], strides = [1, 1, 1]} : vector<2x8x96xf32> to vector<2x8x8xf32>
    %27 = vector.extract_strided_slice %19 {offsets = [0, 0, 32], sizes = [2, 8, 8], strides = [1, 1, 1]} : vector<2x8x96xf32> to vector<2x8x8xf32>
    %28 = vector.extract_strided_slice %19 {offsets = [0, 0, 64], sizes = [2, 8, 8], strides = [1, 1, 1]} : vector<2x8x96xf32> to vector<2x8x8xf32>
    "tpu.trace_start"() <{level = 10 : i32, message = "bqd,bkd->bqk"}> : () -> ()
    %cst_18 = arith.constant dense<0.000000e+00> : vector<2x8x8xf32>
    %29 = tpu.matmul %26, %27, %cst_18 {dimension_numbers = #tpu.dot_dimension_numbers<[2], [2], [1], [1], [0, 0, 0, 1, 1, 1], [0], [0]>} : vector<2x8x8xf32>, vector<2x8x8xf32>, vector<2x8x8xf32> -> vector<2x8x8xf32>
    "tpu.trace_stop"() : () -> ()
    %cst_19 = arith.constant 0.353553385 : f32
    %30 = vector.broadcast %cst_19 : f32 to vector<2x8x8xf32>
    %31 = arith.mulf %29, %30 : vector<2x8x8xf32>
    %32 = vector.broadcast %24 : vector<2x1x8xf32> to vector<2x8x8xf32>
    %33 = arith.addf %31, %32 : vector<2x8x8xf32>
    %cst_20 = arith.constant dense<0xFF800000> : vector<2x8xf32>
    %34 = vector.multi_reduction <maximumf>, %33, %cst_20 [2] : vector<2x8x8xf32> to vector<2x8xf32>
    %35 = vector.shape_cast %34 : vector<2x8xf32> to vector<2x8x1xf32>
    %36 = vector.broadcast %35 : vector<2x8x1xf32> to vector<2x8x8xf32>
    %37 = arith.subf %33, %36 : vector<2x8x8xf32>
    %38 = math.exp %37 : vector<2x8x8xf32>
    %cst_21 = arith.constant dense<0.000000e+00> : vector<2x8xf32>
    %39 = vector.multi_reduction <add>, %38, %cst_21 [2] : vector<2x8x8xf32> to vector<2x8xf32>
    %40 = vector.shape_cast %39 : vector<2x8xf32> to vector<2x8x1xf32>
    %41 = tpu.reciprocal %40 {approx = true} : vector<2x8x1xf32> -> vector<2x8x1xf32>
    %42 = vector.broadcast %41 : vector<2x8x1xf32> to vector<2x8x8xf32>
    %43 = arith.mulf %38, %42 : vector<2x8x8xf32>
    "tpu.trace_start"() <{level = 10 : i32, message = "bqk,bkd->bqd"}> : () -> ()
    %cst_22 = arith.constant dense<0.000000e+00> : vector<2x8x8xf32>
    %44 = tpu.matmul %43, %28, %cst_22 {dimension_numbers = #tpu.dot_dimension_numbers<[2], [1], [1], [2], [0, 0, 0, 1, 1, 2], [0], [0]>} : vector<2x8x8xf32>, vector<2x8x8xf32>, vector<2x8x8xf32> -> vector<2x8x8xf32>
    "tpu.trace_stop"() : () -> ()
    %45 = vector.shape_cast %44 : vector<2x8x8xf32> to vector<16x8xf32>
    %46 = vector.extract_strided_slice %3 {offsets = [0, 0], sizes = [8, 32], strides = [1, 1]} : vector<32x32xf32> to vector<8x32xf32>
    %cst_23 = arith.constant dense<0.000000e+00> : vector<16x32xf32>
    %47 = tpu.matmul %45, %46, %cst_23 {dimension_numbers = #tpu.dot_dimension_numbers<[1], [0], [0], [1], [0, 0, 1, 1], [], []>} : vector<16x8xf32>, vector<8x32xf32>, vector<16x32xf32> -> vector<16x32xf32>
    %48 = arith.addf %25, %47 : vector<16x32xf32>
    %49 = vector.extract_strided_slice %19 {offsets = [0, 0, 8], sizes = [2, 8, 8], strides = [1, 1, 1]} : vector<2x8x96xf32> to vector<2x8x8xf32>
    %50 = vector.extract_strided_slice %19 {offsets = [0, 0, 40], sizes = [2, 8, 8], strides = [1, 1, 1]} : vector<2x8x96xf32> to vector<2x8x8xf32>
    %51 = vector.extract_strided_slice %19 {offsets = [0, 0, 72], sizes = [2, 8, 8], strides = [1, 1, 1]} : vector<2x8x96xf32> to vector<2x8x8xf32>
    "tpu.trace_start"() <{level = 10 : i32, message = "bqd,bkd->bqk"}> : () -> ()
    %cst_24 = arith.constant dense<0.000000e+00> : vector<2x8x8xf32>
    %52 = tpu.matmul %49, %50, %cst_24 {dimension_numbers = #tpu.dot_dimension_numbers<[2], [2], [1], [1], [0, 0, 0, 1, 1, 1], [0], [0]>} : vector<2x8x8xf32>, vector<2x8x8xf32>, vector<2x8x8xf32> -> vector<2x8x8xf32>
    "tpu.trace_stop"() : () -> ()
    %cst_25 = arith.constant 0.353553385 : f32
    %53 = vector.broadcast %cst_25 : f32 to vector<2x8x8xf32>
    %54 = arith.mulf %52, %53 : vector<2x8x8xf32>
    %55 = vector.broadcast %24 : vector<2x1x8xf32> to vector<2x8x8xf32>
    %56 = arith.addf %54, %55 : vector<2x8x8xf32>
    %cst_26 = arith.constant dense<0xFF800000> : vector<2x8xf32>
    %57 = vector.multi_reduction <maximumf>, %56, %cst_26 [2] : vector<2x8x8xf32> to vector<2x8xf32>
    %58 = vector.shape_cast %57 : vector<2x8xf32> to vector<2x8x1xf32>
    %59 = vector.broadcast %58 : vector<2x8x1xf32> to vector<2x8x8xf32>
    %60 = arith.subf %56, %59 : vector<2x8x8xf32>
    %61 = math.exp %60 : vector<2x8x8xf32>
    %cst_27 = arith.constant dense<0.000000e+00> : vector<2x8xf32>
    %62 = vector.multi_reduction <add>, %61, %cst_27 [2] : vector<2x8x8xf32> to vector<2x8xf32>
    %63 = vector.shape_cast %62 : vector<2x8xf32> to vector<2x8x1xf32>
    %64 = tpu.reciprocal %63 {approx = true} : vector<2x8x1xf32> -> vector<2x8x1xf32>
    %65 = vector.broadcast %64 : vector<2x8x1xf32> to vector<2x8x8xf32>
    %66 = arith.mulf %61, %65 : vector<2x8x8xf32>
    "tpu.trace_start"() <{level = 10 : i32, message = "bqk,bkd->bqd"}> : () -> ()
    %cst_28 = arith.constant dense<0.000000e+00> : vector<2x8x8xf32>
    %67 = tpu.matmul %66, %51, %cst_28 {dimension_numbers = #tpu.dot_dimension_numbers<[2], [1], [1], [2], [0, 0, 0, 1, 1, 2], [0], [0]>} : vector<2x8x8xf32>, vector<2x8x8xf32>, vector<2x8x8xf32> -> vector<2x8x8xf32>
    "tpu.trace_stop"() : () -> ()
    %68 = vector.shape_cast %67 : vector<2x8x8xf32> to vector<16x8xf32>
    %69 = vector.extract_strided_slice %3 {offsets = [8, 0], sizes = [8, 32], strides = [1, 1]} : vector<32x32xf32> to vector<8x32xf32>
    %cst_29 = arith.constant dense<0.000000e+00> : vector<16x32xf32>
    %70 = tpu.matmul %68, %69, %cst_29 {dimension_numbers = #tpu.dot_dimension_numbers<[1], [0], [0], [1], [0, 0, 1, 1], [], []>} : vector<16x8xf32>, vector<8x32xf32>, vector<16x32xf32> -> vector<16x32xf32>
    %71 = arith.addf %48, %70 : vector<16x32xf32>
    %72 = vector.extract_strided_slice %19 {offsets = [0, 0, 16], sizes = [2, 8, 8], strides = [1, 1, 1]} : vector<2x8x96xf32> to vector<2x8x8xf32>
    %73 = vector.extract_strided_slice %19 {offsets = [0, 0, 48], sizes = [2, 8, 8], strides = [1, 1, 1]} : vector<2x8x96xf32> to vector<2x8x8xf32>
    %74 = vector.extract_strided_slice %19 {offsets = [0, 0, 80], sizes = [2, 8, 8], strides = [1, 1, 1]} : vector<2x8x96xf32> to vector<2x8x8xf32>
    "tpu.trace_start"() <{level = 10 : i32, message = "bqd,bkd->bqk"}> : () -> ()
    %cst_30 = arith.constant dense<0.000000e+00> : vector<2x8x8xf32>
    %75 = tpu.matmul %72, %73, %cst_30 {dimension_numbers = #tpu.dot_dimension_numbers<[2], [2], [1], [1], [0, 0, 0, 1, 1, 1], [0], [0]>} : vector<2x8x8xf32>, vector<2x8x8xf32>, vector<2x8x8xf32> -> vector<2x8x8xf32>
    "tpu.trace_stop"() : () -> ()
    %cst_31 = arith.constant 0.353553385 : f32
    %76 = vector.broadcast %cst_31 : f32 to vector<2x8x8xf32>
    %77 = arith.mulf %75, %76 : vector<2x8x8xf32>
    %78 = vector.broadcast %24 : vector<2x1x8xf32> to vector<2x8x8xf32>
    %79 = arith.addf %77, %78 : vector<2x8x8xf32>
    %cst_32 = arith.constant dense<0xFF800000> : vector<2x8xf32>
    %80 = vector.multi_reduction <maximumf>, %79, %cst_32 [2] : vector<2x8x8xf32> to vector<2x8xf32>
    %81 = vector.shape_cast %80 : vector<2x8xf32> to vector<2x8x1xf32>
    %82 = vector.broadcast %81 : vector<2x8x1xf32> to vector<2x8x8xf32>
    %83 = arith.subf %79, %82 : vector<2x8x8xf32>
    %84 = math.exp %83 : vector<2x8x8xf32>
    %cst_33 = arith.constant dense<0.000000e+00> : vector<2x8xf32>
    %85 = vector.multi_reduction <add>, %84, %cst_33 [2] : vector<2x8x8xf32> to vector<2x8xf32>
    %86 = vector.shape_cast %85 : vector<2x8xf32> to vector<2x8x1xf32>
    %87 = tpu.reciprocal %86 {approx = true} : vector<2x8x1xf32> -> vector<2x8x1xf32>
    %88 = vector.broadcast %87 : vector<2x8x1xf32> to vector<2x8x8xf32>
    %89 = arith.mulf %84, %88 : vector<2x8x8xf32>
    "tpu.trace_start"() <{level = 10 : i32, message = "bqk,bkd->bqd"}> : () -> ()
    %cst_34 = arith.constant dense<0.000000e+00> : vector<2x8x8xf32>
    %90 = tpu.matmul %89, %74, %cst_34 {dimension_numbers = #tpu.dot_dimension_numbers<[2], [1], [1], [2], [0, 0, 0, 1, 1, 2], [0], [0]>} : vector<2x8x8xf32>, vector<2x8x8xf32>, vector<2x8x8xf32> -> vector<2x8x8xf32>
    "tpu.trace_stop"() : () -> ()
    %91 = vector.shape_cast %90 : vector<2x8x8xf32> to vector<16x8xf32>
    %92 = vector.extract_strided_slice %3 {offsets = [16, 0], sizes = [8, 32], strides = [1, 1]} : vector<32x32xf32> to vector<8x32xf32>
    %cst_35 = arith.constant dense<0.000000e+00> : vector<16x32xf32>
    %93 = tpu.matmul %91, %92, %cst_35 {dimension_numbers = #tpu.dot_dimension_numbers<[1], [0], [0], [1], [0, 0, 1, 1], [], []>} : vector<16x8xf32>, vector<8x32xf32>, vector<16x32xf32> -> vector<16x32xf32>
    %94 = arith.addf %71, %93 : vector<16x32xf32>
    %95 = vector.extract_strided_slice %19 {offsets = [0, 0, 24], sizes = [2, 8, 8], strides = [1, 1, 1]} : vector<2x8x96xf32> to vector<2x8x8xf32>
    %96 = vector.extract_strided_slice %19 {offsets = [0, 0, 56], sizes = [2, 8, 8], strides = [1, 1, 1]} : vector<2x8x96xf32> to vector<2x8x8xf32>
    %97 = vector.extract_strided_slice %19 {offsets = [0, 0, 88], sizes = [2, 8, 8], strides = [1, 1, 1]} : vector<2x8x96xf32> to vector<2x8x8xf32>
    "tpu.trace_start"() <{level = 10 : i32, message = "bqd,bkd->bqk"}> : () -> ()
    %cst_36 = arith.constant dense<0.000000e+00> : vector<2x8x8xf32>
    %98 = tpu.matmul %95, %96, %cst_36 {dimension_numbers = #tpu.dot_dimension_numbers<[2], [2], [1], [1], [0, 0, 0, 1, 1, 1], [0], [0]>} : vector<2x8x8xf32>, vector<2x8x8xf32>, vector<2x8x8xf32> -> vector<2x8x8xf32>
    "tpu.trace_stop"() : () -> ()
    %cst_37 = arith.constant 0.353553385 : f32
    %99 = vector.broadcast %cst_37 : f32 to vector<2x8x8xf32>
    %100 = arith.mulf %98, %99 : vector<2x8x8xf32>
    %101 = vector.broadcast %24 : vector<2x1x8xf32> to vector<2x8x8xf32>
    %102 = arith.addf %100, %101 : vector<2x8x8xf32>
    %cst_38 = arith.constant dense<0xFF800000> : vector<2x8xf32>
    %103 = vector.multi_reduction <maximumf>, %102, %cst_38 [2] : vector<2x8x8xf32> to vector<2x8xf32>
    %104 = vector.shape_cast %103 : vector<2x8xf32> to vector<2x8x1xf32>
    %105 = vector.broadcast %104 : vector<2x8x1xf32> to vector<2x8x8xf32>
    %106 = arith.subf %102, %105 : vector<2x8x8xf32>
    %107 = math.exp %106 : vector<2x8x8xf32>
    %cst_39 = arith.constant dense<0.000000e+00> : vector<2x8xf32>
    %108 = vector.multi_reduction <add>, %107, %cst_39 [2] : vector<2x8x8xf32> to vector<2x8xf32>
    %109 = vector.shape_cast %108 : vector<2x8xf32> to vector<2x8x1xf32>
    %110 = tpu.reciprocal %109 {approx = true} : vector<2x8x1xf32> -> vector<2x8x1xf32>
    %111 = vector.broadcast %110 : vector<2x8x1xf32> to vector<2x8x8xf32>
    %112 = arith.mulf %107, %111 : vector<2x8x8xf32>
    "tpu.trace_start"() <{level = 10 : i32, message = "bqk,bkd->bqd"}> : () -> ()
    %cst_40 = arith.constant dense<0.000000e+00> : vector<2x8x8xf32>
    %113 = tpu.matmul %112, %97, %cst_40 {dimension_numbers = #tpu.dot_dimension_numbers<[2], [1], [1], [2], [0, 0, 0, 1, 1, 2], [0], [0]>} : vector<2x8x8xf32>, vector<2x8x8xf32>, vector<2x8x8xf32> -> vector<2x8x8xf32>
    "tpu.trace_stop"() : () -> ()
    %114 = vector.shape_cast %113 : vector<2x8x8xf32> to vector<16x8xf32>
    %115 = vector.extract_strided_slice %3 {offsets = [24, 0], sizes = [8, 32], strides = [1, 1]} : vector<32x32xf32> to vector<8x32xf32>
    %cst_41 = arith.constant dense<0.000000e+00> : vector<16x32xf32>
    %116 = tpu.matmul %114, %115, %cst_41 {dimension_numbers = #tpu.dot_dimension_numbers<[1], [0], [0], [1], [0, 0, 1, 1], [], []>} : vector<16x8xf32>, vector<8x32xf32>, vector<16x32xf32> -> vector<16x32xf32>
    %117 = arith.addf %94, %116 : vector<16x32xf32>
    %118 = vector.broadcast %10 : vector<1x32xf32> to vector<16x32xf32>
    %119 = arith.addf %117, %118 : vector<16x32xf32>
    %120 = arith.addf %119, %0 : vector<16x32xf32>
    %cst_42 = arith.constant dense<0.000000e+00> : vector<16xf32>
    %121 = vector.multi_reduction <add>, %120, %cst_42 [1] : vector<16x32xf32> to vector<16xf32>
    %122 = vector.shape_cast %121 : vector<16xf32> to vector<16x1xf32>
    %cst_43 = arith.constant 3.200000e+01 : f32
    %123 = vector.broadcast %cst_43 : f32 to vector<16x1xf32>
    %124 = arith.divf %122, %123 : vector<16x1xf32>
    %125 = vector.broadcast %124 : vector<16x1xf32> to vector<16x32xf32>
    %126 = arith.subf %120, %125 : vector<16x32xf32>
    %127 = arith.mulf %126, %126 : vector<16x32xf32>
    %cst_44 = arith.constant dense<0.000000e+00> : vector<16xf32>
    %128 = vector.multi_reduction <add>, %127, %cst_44 [1] : vector<16x32xf32> to vector<16xf32>
    %129 = vector.shape_cast %128 : vector<16xf32> to vector<16x1xf32>
    %cst_45 = arith.constant 3.200000e+01 : f32
    %130 = vector.broadcast %cst_45 : f32 to vector<16x1xf32>
    %131 = arith.divf %129, %130 : vector<16x1xf32>
    %132 = vector.broadcast %124 : vector<16x1xf32> to vector<16x32xf32>
    %133 = arith.subf %120, %132 : vector<16x32xf32>
    %cst_46 = arith.constant 9.99999974E-6 : f32
    %134 = vector.broadcast %cst_46 : f32 to vector<16x1xf32>
    %135 = arith.addf %131, %134 : vector<16x1xf32>
    %136 = math.rsqrt %135 : vector<16x1xf32>
    %137 = vector.broadcast %136 : vector<16x1xf32> to vector<16x32xf32>
    %138 = arith.mulf %133, %137 : vector<16x32xf32>
    %139 = vector.broadcast %11 : vector<1x32xf32> to vector<16x32xf32>
    %140 = arith.mulf %138, %139 : vector<16x32xf32>
    %141 = vector.broadcast %12 : vector<1x32xf32> to vector<16x32xf32>
    %142 = arith.addf %140, %141 : vector<16x32xf32>
    %cst_47 = arith.constant dense<0.000000e+00> : vector<16x64xf32>
    %143 = tpu.matmul %142, %4, %cst_47 {dimension_numbers = #tpu.dot_dimension_numbers<[1], [0], [0], [1], [0, 0, 1, 1], [], []>} : vector<16x32xf32>, vector<32x64xf32>, vector<16x64xf32> -> vector<16x64xf32>
    %144 = vector.broadcast %9 : vector<1x64xf32> to vector<16x64xf32>
    %145 = arith.addf %143, %144 : vector<16x64xf32>
    %cst_48 = arith.constant 5.000000e-01 : f32
    %146 = vector.broadcast %cst_48 : f32 to vector<16x64xf32>
    %147 = arith.mulf %146, %145 : vector<16x64xf32>
    %cst_49 = arith.constant 0.707106769 : f32
    %148 = vector.broadcast %cst_49 : f32 to vector<16x64xf32>
    %149 = arith.mulf %145, %148 : vector<16x64xf32>
    %150 = math.erf %149 : vector<16x64xf32>
    %cst_50 = arith.constant 1.000000e+00 : f32
    %151 = vector.broadcast %cst_50 : f32 to vector<16x64xf32>
    %152 = arith.addf %151, %150 : vector<16x64xf32>
    %153 = arith.mulf %147, %152 : vector<16x64xf32>
    %cst_51 = arith.constant dense<0.000000e+00> : vector<16x32xf32>
    %154 = tpu.matmul %153, %5, %cst_51 {dimension_numbers = #tpu.dot_dimension_numbers<[1], [0], [0], [1], [0, 0, 1, 1], [], []>} : vector<16x64xf32>, vector<64x32xf32>, vector<16x32xf32> -> vector<16x32xf32>
    %155 = vector.broadcast %13 : vector<1x32xf32> to vector<16x32xf32>
    %156 = arith.addf %154, %155 : vector<16x32xf32>
    %157 = arith.addf %142, %156 : vector<16x32xf32>
    %cst_52 = arith.constant dense<0.000000e+00> : vector<16xf32>
    %158 = vector.multi_reduction <add>, %157, %cst_52 [1] : vector<16x32xf32> to vector<16xf32>
    %159 = vector.shape_cast %158 : vector<16xf32> to vector<16x1xf32>
    %cst_53 = arith.constant 3.200000e+01 : f32
    %160 = vector.broadcast %cst_53 : f32 to vector<16x1xf32>
    %161 = arith.divf %159, %160 : vector<16x1xf32>
    %162 = vector.broadcast %161 : vector<16x1xf32> to vector<16x32xf32>
    %163 = arith.subf %157, %162 : vector<16x32xf32>
    %164 = arith.mulf %163, %163 : vector<16x32xf32>
    %cst_54 = arith.constant dense<0.000000e+00> : vector<16xf32>
    %165 = vector.multi_reduction <add>, %164, %cst_54 [1] : vector<16x32xf32> to vector<16xf32>
    %166 = vector.shape_cast %165 : vector<16xf32> to vector<16x1xf32>
    %cst_55 = arith.constant 3.200000e+01 : f32
    %167 = vector.broadcast %cst_55 : f32 to vector<16x1xf32>
    %168 = arith.divf %166, %167 : vector<16x1xf32>
    %169 = vector.broadcast %161 : vector<16x1xf32> to vector<16x32xf32>
    %170 = arith.subf %157, %169 : vector<16x32xf32>
    %cst_56 = arith.constant 9.99999974E-6 : f32
    %171 = vector.broadcast %cst_56 : f32 to vector<16x1xf32>
    %172 = arith.addf %168, %171 : vector<16x1xf32>
    %173 = math.rsqrt %172 : vector<16x1xf32>
    %174 = vector.broadcast %173 : vector<16x1xf32> to vector<16x32xf32>
    %175 = arith.mulf %170, %174 : vector<16x32xf32>
    %176 = vector.broadcast %14 : vector<1x32xf32> to vector<16x32xf32>
    %177 = arith.mulf %175, %176 : vector<16x32xf32>
    %178 = vector.broadcast %15 : vector<1x32xf32> to vector<16x32xf32>
    %179 = arith.addf %177, %178 : vector<16x32xf32>
    %c0_57 = arith.constant 0 : index
    %c0_58 = arith.constant 0 : index
    %180 = vector.load %arg8[%c0_57, %c0_58] : memref<16x32xf32, #tpu.memory_space<vmem>>, vector<16x32xf32>
    tpu.vector_store %arg8[%c0_57, %c0_58], %179 {strides = array<i32>} : memref<16x32xf32, #tpu.memory_space<vmem>>, vector<16x32xf32>,
    return
  }
}

</mosaic_0001>

<llo_original>
// kernel: transformer_layer.1
$region0: #{transformer_layer.1}
  #allocation0 [shape = 'u32[]', space=smem, size = 0x4, offset = 0x4, fixed_abs, tag = 'smem constant byte address 0x4 - core index']
  #allocation1 [shape = 'u32[72,128]{1,0:T(1,128)}', space=vmem, size = 0x9000, scoped, tag = 'internal scratch']
  %s0 = inlined_call_operand.hbm [shape: f32[16,32], index: 0, kind: input, shape index: {}]
  %s1 = inlined_call_operand.hbm [shape: f32[2,8], index: 1, kind: input, shape index: {}]
  %s2 = inlined_call_operand.vmem [shape: f32[32,96], index: 2, kind: input, shape index: {}]
  %s3 = inlined_call_operand.vmem [shape: f32[32,32], index: 3, kind: input, shape index: {}]
  %s4 = inlined_call_operand.vmem [shape: f32[32,64], index: 4, kind: input, shape index: {}]
  %s5 = inlined_call_operand.vmem [shape: f32[64,32], index: 5, kind: input, shape index: {}]
  %s6 = inlined_call_operand.hbm [shape: f32[2,96], index: 6, kind: input, shape index: {}]
  %s7 = inlined_call_operand.hbm [shape: f32[6,32], index: 7, kind: input, shape index: {}]
  %s8 = inlined_call_operand.hbm [shape: f32[16,32], index: 8, kind: output, shape index: {}]
  %s9 = sld [smem:[#allocation0]]
  $region58: #{transformer_layer.1} parent=0
    _
  %s11 = ssub.s32 1, %s9
  %s12 = scalar_select 0, %s11, %s9
  $region1: #{transformer_layer.1} parent=0
    #allocation2 [shape = 'u8[8192]{0}', space=vmem, size = 0x2000, scoped, tag = 'input window, operand 0, single buffered']
    #allocation3 [shape = 's32[1]{0}', space=sflag, size = 0x4, scoped, tag = 'scoped memory for transformer_layer.1']
    #allocation4 [shape = 's32[1]{0}', space=sflag, size = 0x4, scoped, tag = 'scoped memory for transformer_layer.1']
    #allocation5 [shape = 'u8[1024]{0}', space=vmem, size = 0x400, scoped, tag = 'input window, operand 1, single buffered']
    #allocation6 [shape = 's32[1]{0}', space=sflag, size = 0x4, scoped, tag = 'scoped memory for transformer_layer.1']
    #allocation7 [shape = 'u8[1024]{0}', space=vmem, size = 0x400, scoped, tag = 'input window, operand 6, single buffered']
    #allocation8 [shape = 'u8[4096]{0}', space=vmem, size = 0x1000, scoped, tag = 'input window, operand 7, single buffered']
    #allocation9 [shape = 's32[1]{0}', space=sflag, size = 0x4, scoped, tag = 'scoped memory for transformer_layer.1']
    #allocation10 [shape = 'u8[8192]{0}', space=vmem, size = 0x2000, scoped, tag = 'output window, operand 0, single buffered']
    %13 = vsyncpa [#allocation3], 0
    %14 = vsyncpa [#allocation6], 0
    %15 = vsyncpa [#allocation9], 0
    %16 = vsyncpa [#allocation4], 0
    // Predicated region
    $region2: #{transformer_layer.1} parent=1 // pred_check
      _
    $region3: #{transformer_layer.1} parent=1 // pred_check_branch
      %18 = sbr.rel (0) target = $region5
    $region4: #{transformer_layer.1} parent=1 // pred_region
      %20 = vsyncadd [#allocation3], 0
      %s21 = sshll.u32 %s0, 4
      %s22 = int_to_ptr.hbm [resolvable:$true] %s21
      %s23 = sshll.u32 [#allocation2], 4
      %s24 = int_to_ptr.vmem [resolvable:$true] %s23
      %29 = dma.hbm_to_vmem [thread:$0]  %s22, 256, %s24, [#allocation3], 128, 128, 8
    $region5: #{transformer_layer.1} parent=1 // pred_fallthru
      _
    // Predicated region
    $region6: #{transformer_layer.1} parent=1 // pred_check
      _
    $region7: #{transformer_layer.1} parent=1 // pred_check_branch
      %31 = sbr.rel (0) target = $region9
    $region8: #{transformer_layer.1} parent=1 // pred_region
      %33 = vsyncadd [#allocation6], 0
      %s35 = sshll.u32 %s1, 4
      %s36 = int_to_ptr.hbm [resolvable:$true] %s35
      %s37 = sshll.u32 [#allocation5], 4
      %s38 = int_to_ptr.vmem [resolvable:$true] %s37
      %40 = dma.hbm_to_vmem [thread:$0]  %s36, 32, %s38, [#allocation6]
    $region9: #{transformer_layer.1} parent=1 // pred_fallthru
      _
    // Predicated region
    $region10: #{transformer_layer.1} parent=1 // pred_check
      _
    $region11: #{transformer_layer.1} parent=1 // pred_check_branch
      %42 = sbr.rel (0) target = $region13
    $region12: #{transformer_layer.1} parent=1 // pred_region
      _
    $region13: #{transformer_layer.1} parent=1 // pred_fallthru
      _
    // Predicated region
    $region14: #{transformer_layer.1} parent=1 // pred_check
      _
    $region15: #{transformer_layer.1} parent=1 // pred_check_branch
      %44 = sbr.rel (0) target = $region17
    $region16: #{transformer_layer.1} parent=1 // pred_region
      _
    $region17: #{transformer_layer.1} parent=1 // pred_fallthru
      _
    // Predicated region
    $region18: #{transformer_layer.1} parent=1 // pred_check
      _
    $region19: #{transformer_layer.1} parent=1 // pred_check_branch
      %46 = sbr.rel (0) target = $region21
    $region20: #{transformer_layer.1} parent=1 // pred_region
      _
    $region21: #{transformer_layer.1} parent=1 // pred_fallthru
      _
    // Predicated region
    $region22: #{transformer_layer.1} parent=1 // pred_check
      _
    $region23: #{transformer_layer.1} parent=1 // pred_check_branch
      %48 = sbr.rel (0) target = $region25
    $region24: #{transformer_layer.1} parent=1 // pred_region
      _
    $region25: #{transformer_layer.1} parent=1 // pred_fallthru
      _
    // Predicated region
    $region26: #{transformer_layer.1} parent=1 // pred_check
      _
    $region27: #{transformer_layer.1} parent=1 // pred_check_branch
      %50 = sbr.rel (0) target = $region29
    $region28: #{transformer_layer.1} parent=1 // pred_region
      %52 = vsyncadd [#allocation6], 0
      %s54 = sshll.u32 %s6, 4
      %s55 = int_to_ptr.hbm [resolvable:$true] %s54
      %s56 = sshll.u32 [#allocation7], 4
      %s57 = int_to_ptr.vmem [resolvable:$true] %s56
      %59 = dma.hbm_to_vmem [thread:$0]  %s55, 32, %s57, [#allocation6]
    $region29: #{transformer_layer.1} parent=1 // pred_fallthru
      _
    // Predicated region
    $region30: #{transformer_layer.1} parent=1 // pred_check
      _
    $region31: #{transformer_layer.1} parent=1 // pred_check_branch
      %61 = sbr.rel (0) target = $region33
    $region32: #{transformer_layer.1} parent=1 // pred_region
      %63 = vsyncadd [#allocation9], 0
      %s65 = sshll.u32 %s7, 4
      %s66 = int_to_ptr.hbm [resolvable:$true] %s65
      %s67 = sshll.u32 [#allocation8], 4
      %s68 = int_to_ptr.vmem [resolvable:$true] %s67
      %70 = dma.hbm_to_vmem [thread:$0]  %s66, 128, %s68, [#allocation9]
    $region33: #{transformer_layer.1} parent=1 // pred_fallthru
      _
    // Predicated region
    $region34: #{transformer_layer.1} parent=1 // pred_check
      _
    $region35: #{transformer_layer.1} parent=1 // pred_check_branch
      %72 = sbr.rel (0) target = $region37
    $region36: #{transformer_layer.1} parent=1 // pred_region
      %74 = dma.done [#allocation3], 256
    $region37: #{transformer_layer.1} parent=1 // pred_fallthru
      _
    // Predicated region
    $region38: #{transformer_layer.1} parent=1 // pred_check
      _
    $region39: #{transformer_layer.1} parent=1 // pred_check_branch
      %76 = sbr.rel (0) target = $region41
    $region40: #{transformer_layer.1} parent=1 // pred_region
      %78 = dma.done [#allocation6], 32
    $region41: #{transformer_layer.1} parent=1 // pred_fallthru
      _
    // Predicated region
    $region42: #{transformer_layer.1} parent=1 // pred_check
      _
    $region43: #{transformer_layer.1} parent=1 // pred_check_branch
      %80 = sbr.rel (0) target = $region45
    $region44: #{transformer_layer.1} parent=1 // pred_region
      %82 = dma.done [#allocation6], 32
    $region45: #{transformer_layer.1} parent=1 // pred_fallthru
      _
    // Predicated region
    $region46: #{transformer_layer.1} parent=1 // pred_check
      _
    $region47: #{transformer_layer.1} parent=1 // pred_check_branch
      %84 = sbr.rel (0) target = $region49
    $region48: #{transformer_layer.1} parent=1 // pred_region
      %86 = dma.done [#allocation9], 128
    $region49: #{transformer_layer.1} parent=1 // pred_fallthru
      _
    %v87 = vld [vmem:[#allocation2] sm:$0xff]
    %v88 = vld [vmem:[#allocation2 + $0x8] sm:$0xff]
    %v89 = vld [vmem:[#allocation5] sm:$0x3]
    %v90 = vld [vmem:[%s2] sm:$0xff]
    %v91 = vld [vmem:[%s2 + $0x8] sm:$0xff]
    %v92 = vld [vmem:[%s2 + $0x10] sm:$0xff]
    %v93 = vld [vmem:[%s2 + $0x18] sm:$0xff]
    %v94 = vld [vmem:[%s3] sm:$0xff]
    %v95 = vld [vmem:[%s3 + $0x8] sm:$0xff]
    %v96 = vld [vmem:[%s3 + $0x10] sm:$0xff]
    %v97 = vld [vmem:[%s3 + $0x18] sm:$0xff]
    %v98 = vld [vmem:[%s4] sm:$0xff]
    %v99 = vld [vmem:[%s4 + $0x8] sm:$0xff]
    %v100 = vld [vmem:[%s4 + $0x10] sm:$0xff]
    %v101 = vld [vmem:[%s4 + $0x18] sm:$0xff]
    %v102 = vld [vmem:[%s5] sm:$0xff]
    %v103 = vld [vmem:[%s5 + $0x8] sm:$0xff]
    %v104 = vld [vmem:[%s5 + $0x10] sm:$0xff]
    %v105 = vld [vmem:[%s5 + $0x18] sm:$0xff]
    %v106 = vld [vmem:[%s5 + $0x20] sm:$0xff]
    %v107 = vld [vmem:[%s5 + $0x28] sm:$0xff]
    %v108 = vld [vmem:[%s5 + $0x30] sm:$0xff]
    %v109 = vld [vmem:[%s5 + $0x38] sm:$0xff]
    %v110 = vld [vmem:[#allocation7] sm:$0x3]
    %v111 = vld [vmem:[#allocation8] sm:$0x3f]
    %v112 = vperm.slane %v110, 0
    %vm113 = vcmask 261120
    %v115 = vsel %vm113, %v87, 0
    %v118 = vsel %vm113, %v88, 0
    %120 = vmatpush.msra.mxu0 0.0
    %121 = vmatpush.msra.mxu0 0.0
    %122 = vmatpush.msra.mxu0 0.0
    %123 = vmatpush.msra.mxu0 0.0
    %124 = vmatpush.msra.mxu0 0.0
    %125 = vmatpush.msra.mxu0 0.0
    %126 = vmatpush.msra.mxu0 0.0
    %127 = vmatpush.msra.mxu0 0.0
    %128 = vmatpush.msra.mxu0 0.0
    %129 = vmatpush.msra.mxu0 0.0
    %130 = vmatpush.msra.mxu0 0.0
    %131 = vmatpush.msra.mxu0 0.0
    %132 = vmatpush.msra.mxu0 %v93
    %133 = vmatpush.msra.mxu0 %v92
    %134 = vmatpush.msra.mxu0 %v91
    %135 = vmatpush.msra.mxu0 %v90
    %136 = vmatmul.f32.gmra.mxu0 %v115
    %v137 = vpop.f32.mrf.mxu0
    %v138 = vadd.f32 %v112, %v137
    %139 = vmatmul.f32.gmra.mxu0 %v118
    %v140 = vpop.f32.mrf.mxu0
    %v141 = vadd.f32 %v112, %v140
    %142 = vdwg.mxu0
    %v143 = vsub.f32 1.0, %v89
    %v144 = vmul.f32 %v143, -10000.0
    %v146 = vrot.slane %v144, 1
    %148 = vrot.lane.b32.xlu0 %v138, 96
    %v149 = vpop.permute.xlu0 %148
    %vm150 = vcmask 64512
    %v151 = vsel %vm150, %v138, 0
    %v153 = vsel %vm150, %v149, 0
    %155 = vmatpush.xpose.msra.mxu0 0.0
    %156 = vmatpush.xpose.msra.mxu0 0.0
    %157 = vmatpush.xpose.msra.mxu0 0.0
    %158 = vmatpush.xpose.msra.mxu0 0.0
    %159 = vmatpush.xpose.msra.mxu0 0.0
    %160 = vmatpush.xpose.msra.mxu0 0.0
    %161 = vmatpush.xpose.msra.mxu0 0.0
    %162 = vmatpush.xpose.msra.mxu0 0.0
    %163 = vmatpush.xpose.msra.mxu0 0.0
    %164 = vmatpush.xpose.msra.mxu0 0.0
    %165 = vmatpush.xpose.msra.mxu0 0.0
    %166 = vmatpush.xpose.msra.mxu0 0.0
    %167 = vmatpush.xpose.msra.mxu0 0.0
    %168 = vmatpush.xpose.msra.mxu0 0.0
    %169 = vmatpush.xpose.msra.mxu0 0.0
    %170 = vmatpush.xpose.msra.mxu0 %v153
    %171 = vmatmul.f32.gmra.mxu0 %v151
    %v172 = vpop.f32.mrf.mxu0
    %v173 = vadd.f32 0.0, %v172
    %174 = vdwg.mxu0
    %176 = vrot.lane.b32.xlu0 %v141, 96
    %v177 = vpop.permute.xlu0 %176
    %v178 = vsel %vm150, %v141, 0
    %v180 = vsel %vm150, %v177, 0
    %182 = vmatpush.xpose.msra.mxu0 0.0
    %183 = vmatpush.xpose.msra.mxu0 0.0
    %184 = vmatpush.xpose.msra.mxu0 0.0
    %185 = vmatpush.xpose.msra.mxu0 0.0
    %186 = vmatpush.xpose.msra.mxu0 0.0
    %187 = vmatpush.xpose.msra.mxu0 0.0
    %188 = vmatpush.xpose.msra.mxu0 0.0
    %189 = vmatpush.xpose.msra.mxu0 0.0
    %190 = vmatpush.xpose.msra.mxu0 0.0
    %191 = vmatpush.xpose.msra.mxu0 0.0
    %192 = vmatpush.xpose.msra.mxu0 0.0
    %193 = vmatpush.xpose.msra.mxu0 0.0
    %194 = vmatpush.xpose.msra.mxu0 0.0
    %195 = vmatpush.xpose.msra.mxu0 0.0
    %196 = vmatpush.xpose.msra.mxu0 0.0
    %197 = vmatpush.xpose.msra.mxu0 %v180
    %198 = vmatmul.f32.gmra.mxu0 %v178
    %v199 = vpop.f32.mrf.mxu0
    %v200 = vadd.f32 0.0, %v199
    %201 = vdwg.mxu0
    %v202 = vmul.f32 %v173, 0.35355338
    %v203 = vmul.f32 %v200, 0.35355338
    %v204 = vperm.slane %v144, 0
    %v205 = vperm.slane %v146, 0
    %v208 = vadd.f32 %v202, %v204
    %v209 = vadd.f32 %v203, %v205
    %v210 = vsel %vm150, %v208, -inf
    %211 = vmax.xlane.f32.xlu0 %v210
    %v212 = vpop.xlane.xlu0 %211
    %v213 = vsel %vm150, %v209, -inf
    %214 = vmax.xlane.f32.xlu0 %v213
    %v215 = vpop.xlane.xlu0 %214
    %v216 = vsub.f32 %v208, %v212
    %v217 = vsub.f32 %v209, %v215
    %v218 = vmul.f32 %v216, 1.442695
    %v219 = vpow.pop %v218
    %v220 = vmul.f32 %v217, 1.442695
    %v221 = vpow.pop %v220
    %v222 = vsel %vm150, %v219, 0.0
    %223 = vadd.xlane.f32.xlu0 %v222
    %v224 = vpop.xlane.xlu0 %223
    %v225 = vsel %vm150, %v221, 0.0
    %226 = vadd.xlane.f32.xlu0 %v225
    %v227 = vpop.xlane.xlu0 %226
    %v228 = vrcp.pop %v224
    %v229 = vrcp.pop %v227
    %v230 = vmul.f32 %v219, %v228
    %v231 = vmul.f32 %v221, %v229
    %232 = vrot.lane.b32.xlu0 %v138, 64
    %v233 = vpop.permute.xlu0 %232
    %v236 = vsel %vm150, %v230, 0
    %238 = vmatpush.msra.mxu0 0.0
    %239 = vmatpush.msra.mxu0 0.0
    %240 = vmatpush.msra.mxu0 0.0
    %241 = vmatpush.msra.mxu0 0.0
    %242 = vmatpush.msra.mxu0 0.0
    %243 = vmatpush.msra.mxu0 0.0
    %244 = vmatpush.msra.mxu0 0.0
    %245 = vmatpush.msra.mxu0 0.0
    %246 = vmatpush.msra.mxu0 0.0
    %247 = vmatpush.msra.mxu0 0.0
    %248 = vmatpush.msra.mxu0 0.0
    %249 = vmatpush.msra.mxu0 0.0
    %250 = vmatpush.msra.mxu0 0.0
    %251 = vmatpush.msra.mxu0 0.0
    %252 = vmatpush.msra.mxu0 0.0
    %253 = vmatpush.msra.mxu0 %v233
    %254 = vmatmul.f32.gmra.mxu0 %v236
    %v255 = vpop.f32.mrf.mxu0
    %v256 = vadd.f32 0.0, %v255
    %257 = vdwg.mxu0
    %258 = vrot.lane.b32.xlu0 %v141, 64
    %v259 = vpop.permute.xlu0 %258
    %v262 = vsel %vm150, %v231, 0
    %264 = vmatpush.msra.mxu0 0.0
    %265 = vmatpush.msra.mxu0 0.0
    %266 = vmatpush.msra.mxu0 0.0
    %267 = vmatpush.msra.mxu0 0.0
    %268 = vmatpush.msra.mxu0 0.0
    %269 = vmatpush.msra.mxu0 0.0
    %270 = vmatpush.msra.mxu0 0.0
    %271 = vmatpush.msra.mxu0 0.0
    %272 = vmatpush.msra.mxu0 0.0
    %273 = vmatpush.msra.mxu0 0.0
    %274 = vmatpush.msra.mxu0 0.0
    %275 = vmatpush.msra.mxu0 0.0
    %276 = vmatpush.msra.mxu0 0.0
    %277 = vmatpush.msra.mxu0 0.0
    %278 = vmatpush.msra.mxu0 0.0
    %279 = vmatpush.msra.mxu0 %v259
    %280 = vmatmul.f32.gmra.mxu0 %v262
    %v281 = vpop.f32.mrf.mxu0
    %v282 = vadd.f32 0.0, %v281
    %283 = vdwg.mxu0
    %284 = vrot.lane.b32.xlu0 %v138, 120
    %v285 = vpop.permute.xlu0 %284
    %286 = vrot.lane.b32.xlu0 %v138, 88
    %v287 = vpop.permute.xlu0 %286
    %v288 = vsel %vm150, %v285, 0
    %v290 = vsel %vm150, %v287, 0
    %292 = vmatpush.xpose.msra.mxu0 0.0
    %293 = vmatpush.xpose.msra.mxu0 0.0
    %294 = vmatpush.xpose.msra.mxu0 0.0
    %295 = vmatpush.xpose.msra.mxu0 0.0
    %296 = vmatpush.xpose.msra.mxu0 0.0
    %297 = vmatpush.xpose.msra.mxu0 0.0
    %298 = vmatpush.xpose.msra.mxu0 0.0
    %299 = vmatpush.xpose.msra.mxu0 0.0
    %300 = vmatpush.xpose.msra.mxu0 0.0
    %301 = vmatpush.xpose.msra.mxu0 0.0
    %302 = vmatpush.xpose.msra.mxu0 0.0
    %303 = vmatpush.xpose.msra.mxu0 0.0
    %304 = vmatpush.xpose.msra.mxu0 0.0
    %305 = vmatpush.xpose.msra.mxu0 0.0
    %306 = vmatpush.xpose.msra.mxu0 0.0
    %307 = vmatpush.xpose.msra.mxu0 %v290
    %308 = vmatmul.f32.gmra.mxu0 %v288
    %v309 = vpop.f32.mrf.mxu0
    %v310 = vadd.f32 0.0, %v309
    %311 = vdwg.mxu0
    %312 = vrot.lane.b32.xlu0 %v141, 120
    %v313 = vpop.permute.xlu0 %312
    %314 = vrot.lane.b32.xlu0 %v141, 88
    %v315 = vpop.permute.xlu0 %314
    %v316 = vsel %vm150, %v313, 0
    %v318 = vsel %vm150, %v315, 0
    %320 = vmatpush.xpose.msra.mxu0 0.0
    %321 = vmatpush.xpose.msra.mxu0 0.0
    %322 = vmatpush.xpose.msra.mxu0 0.0
    %323 = vmatpush.xpose.msra.mxu0 0.0
    %324 = vmatpush.xpose.msra.mxu0 0.0
    %325 = vmatpush.xpose.msra.mxu0 0.0
    %326 = vmatpush.xpose.msra.mxu0 0.0
    %327 = vmatpush.xpose.msra.mxu0 0.0
    %328 = vmatpush.xpose.msra.mxu0 0.0
    %329 = vmatpush.xpose.msra.mxu0 0.0
    %330 = vmatpush.xpose.msra.mxu0 0.0
    %331 = vmatpush.xpose.msra.mxu0 0.0
    %332 = vmatpush.xpose.msra.mxu0 0.0
    %333 = vmatpush.xpose.msra.mxu0 0.0
    %334 = vmatpush.xpose.msra.mxu0 0.0
    %335 = vmatpush.xpose.msra.mxu0 %v318
    %336 = vmatmul.f32.gmra.mxu0 %v316
    %v337 = vpop.f32.mrf.mxu0
    %v338 = vadd.f32 0.0, %v337
    %339 = vdwg.mxu0
    %v340 = vmul.f32 %v310, 0.35355338
    %v341 = vmul.f32 %v338, 0.35355338
    %v342 = vadd.f32 %v340, %v204
    %v343 = vadd.f32 %v341, %v205
    %v344 = vsel %vm150, %v342, -inf
    %345 = vmax.xlane.f32.xlu0 %v344
    %v346 = vpop.xlane.xlu0 %345
    %v347 = vsel %vm150, %v343, -inf
    %348 = vmax.xlane.f32.xlu0 %v347
    %v349 = vpop.xlane.xlu0 %348
    %v350 = vsub.f32 %v342, %v346
    %v351 = vsub.f32 %v343, %v349
    %v352 = vmul.f32 %v350, 1.442695
    %v353 = vpow.pop %v352
    %v354 = vmul.f32 %v351, 1.442695
    %v355 = vpow.pop %v354
    %v356 = vsel %vm150, %v353, 0.0
    %357 = vadd.xlane.f32.xlu0 %v356
    %v358 = vpop.xlane.xlu0 %357
    %v359 = vsel %vm150, %v355, 0.0
    %360 = vadd.xlane.f32.xlu0 %v359
    %v361 = vpop.xlane.xlu0 %360
    %v362 = vrcp.pop %v358
    %v363 = vrcp.pop %v361
    %v364 = vmul.f32 %v353, %v362
    %v365 = vmul.f32 %v355, %v363
    %366 = vrot.lane.b32.xlu0 %v138, 56
    %v367 = vpop.permute.xlu0 %366
    %v370 = vsel %vm150, %v364, 0
    %372 = vmatpush.msra.mxu0 0.0
    %373 = vmatpush.msra.mxu0 0.0
    %374 = vmatpush.msra.mxu0 0.0
    %375 = vmatpush.msra.mxu0 0.0
    %376 = vmatpush.msra.mxu0 0.0
    %377 = vmatpush.msra.mxu0 0.0
    %378 = vmatpush.msra.mxu0 0.0
    %379 = vmatpush.msra.mxu0 0.0
    %380 = vmatpush.msra.mxu0 0.0
    %381 = vmatpush.msra.mxu0 0.0
    %382 = vmatpush.msra.mxu0 0.0
    %383 = vmatpush.msra.mxu0 0.0
    %384 = vmatpush.msra.mxu0 0.0
    %385 = vmatpush.msra.mxu0 0.0
    %386 = vmatpush.msra.mxu0 0.0
    %387 = vmatpush.msra.mxu0 %v367
    %388 = vmatmul.f32.gmra.mxu0 %v370
    %v389 = vpop.f32.mrf.mxu0
    %v390 = vadd.f32 0.0, %v389
    %391 = vdwg.mxu0
    %392 = vrot.lane.b32.xlu0 %v141, 56
    %v393 = vpop.permute.xlu0 %392
    %v396 = vsel %vm150, %v365, 0
    %398 = vmatpush.msra.mxu0 0.0
    %399 = vmatpush.msra.mxu0 0.0
    %400 = vmatpush.msra.mxu0 0.0
    %401 = vmatpush.msra.mxu0 0.0
    %402 = vmatpush.msra.mxu0 0.0
    %403 = vmatpush.msra.mxu0 0.0
    %404 = vmatpush.msra.mxu0 0.0
    %405 = vmatpush.msra.mxu0 0.0
    %406 = vmatpush.msra.mxu0 0.0
    %407 = vmatpush.msra.mxu0 0.0
    %408 = vmatpush.msra.mxu0 0.0
    %409 = vmatpush.msra.mxu0 0.0
    %410 = vmatpush.msra.mxu0 0.0
    %411 = vmatpush.msra.mxu0 0.0
    %412 = vmatpush.msra.mxu0 0.0
    %413 = vmatpush.msra.mxu0 %v393
    %414 = vmatmul.f32.gmra.mxu0 %v396
    %v415 = vpop.f32.mrf.mxu0
    %v416 = vadd.f32 0.0, %v415
    %417 = vdwg.mxu0
    %v419 = vsel %vm150, %v390, 0
    %v422 = vsel %vm150, %v416, 0
    %424 = vmatpush.msra.mxu0 0.0
    %425 = vmatpush.msra.mxu0 0.0
    %426 = vmatpush.msra.mxu0 0.0
    %427 = vmatpush.msra.mxu0 0.0
    %428 = vmatpush.msra.mxu0 0.0
    %429 = vmatpush.msra.mxu0 0.0
    %430 = vmatpush.msra.mxu0 0.0
    %431 = vmatpush.msra.mxu0 0.0
    %432 = vmatpush.msra.mxu0 0.0
    %433 = vmatpush.msra.mxu0 0.0
    %434 = vmatpush.msra.mxu0 0.0
    %435 = vmatpush.msra.mxu0 0.0
    %436 = vmatpush.msra.mxu0 0.0
    %437 = vmatpush.msra.mxu0 0.0
    %438 = vmatpush.msra.mxu0 0.0
    %439 = vmatpush.msra.mxu0 %v95
    %440 = vmatmul.f32.gmra.mxu0 %v419
    %v441 = vpop.f32.mrf.mxu0
    %v442 = vadd.f32 0.0, %v441
    %443 = vmatmul.f32.gmra.mxu0 %v422
    %v444 = vpop.f32.mrf.mxu0
    %v445 = vadd.f32 0.0, %v444
    %446 = vdwg.mxu0
    %v448 = vsel %vm150, %v256, 0
    %v451 = vsel %vm150, %v282, 0
    %453 = vmatpush.msra.mxu0 0.0
    %454 = vmatpush.msra.mxu0 0.0
    %455 = vmatpush.msra.mxu0 0.0
    %456 = vmatpush.msra.mxu0 0.0
    %457 = vmatpush.msra.mxu0 0.0
    %458 = vmatpush.msra.mxu0 0.0
    %459 = vmatpush.msra.mxu0 0.0
    %460 = vmatpush.msra.mxu0 0.0
    %461 = vmatpush.msra.mxu0 0.0
    %462 = vmatpush.msra.mxu0 0.0
    %463 = vmatpush.msra.mxu0 0.0
    %464 = vmatpush.msra.mxu0 0.0
    %465 = vmatpush.msra.mxu0 0.0
    %466 = vmatpush.msra.mxu0 0.0
    %467 = vmatpush.msra.mxu0 0.0
    %468 = vmatpush.msra.mxu0 %v94
    %469 = vmatmul.f32.gmra.mxu0 %v448
    %v470 = vpop.f32.mrf.mxu0
    %v471 = vadd.f32 %v442, %v470
    %472 = vmatmul.f32.gmra.mxu0 %v451
    %v473 = vpop.f32.mrf.mxu0
    %v474 = vadd.f32 %v445, %v473
    %475 = vdwg.mxu0
    %476 = vrot.lane.b32.xlu0 %v138, 112
    %v477 = vpop.permute.xlu0 %476
    %478 = vrot.lane.b32.xlu0 %v138, 80
    %v479 = vpop.permute.xlu0 %478
    %v480 = vsel %vm150, %v477, 0
    %v482 = vsel %vm150, %v479, 0
    %484 = vmatpush.xpose.msra.mxu0 0.0
    %485 = vmatpush.xpose.msra.mxu0 0.0
    %486 = vmatpush.xpose.msra.mxu0 0.0
    %487 = vmatpush.xpose.msra.mxu0 0.0
    %488 = vmatpush.xpose.msra.mxu0 0.0
    %489 = vmatpush.xpose.msra.mxu0 0.0
    %490 = vmatpush.xpose.msra.mxu0 0.0
    %491 = vmatpush.xpose.msra.mxu0 0.0
    %492 = vmatpush.xpose.msra.mxu0 0.0
    %493 = vmatpush.xpose.msra.mxu0 0.0
    %494 = vmatpush.xpose.msra.mxu0 0.0
    %495 = vmatpush.xpose.msra.mxu0 0.0
    %496 = vmatpush.xpose.msra.mxu0 0.0
    %497 = vmatpush.xpose.msra.mxu0 0.0
    %498 = vmatpush.xpose.msra.mxu0 0.0
    %499 = vmatpush.xpose.msra.mxu0 %v482
    %500 = vmatmul.f32.gmra.mxu0 %v480
    %v501 = vpop.f32.mrf.mxu0
    %v502 = vadd.f32 0.0, %v501
    %503 = vdwg.mxu0
    %504 = vrot.lane.b32.xlu0 %v141, 112
    %v505 = vpop.permute.xlu0 %504
    %506 = vrot.lane.b32.xlu0 %v141, 80
    %v507 = vpop.permute.xlu0 %506
    %v508 = vsel %vm150, %v505, 0
    %v510 = vsel %vm150, %v507, 0
    %512 = vmatpush.xpose.msra.mxu0 0.0
    %513 = vmatpush.xpose.msra.mxu0 0.0
    %514 = vmatpush.xpose.msra.mxu0 0.0
    %515 = vmatpush.xpose.msra.mxu0 0.0
    %516 = vmatpush.xpose.msra.mxu0 0.0
    %517 = vmatpush.xpose.msra.mxu0 0.0
    %518 = vmatpush.xpose.msra.mxu0 0.0
    %519 = vmatpush.xpose.msra.mxu0 0.0
    %520 = vmatpush.xpose.msra.mxu0 0.0
    %521 = vmatpush.xpose.msra.mxu0 0.0
    %522 = vmatpush.xpose.msra.mxu0 0.0
    %523 = vmatpush.xpose.msra.mxu0 0.0
    %524 = vmatpush.xpose.msra.mxu0 0.0
    %525 = vmatpush.xpose.msra.mxu0 0.0
    %526 = vmatpush.xpose.msra.mxu0 0.0
    %527 = vmatpush.xpose.msra.mxu0 %v510
    %528 = vmatmul.f32.gmra.mxu0 %v508
    %v529 = vpop.f32.mrf.mxu0
    %v530 = vadd.f32 0.0, %v529
    %531 = vdwg.mxu0
    %v532 = vmul.f32 %v502, 0.35355338
    %v533 = vmul.f32 %v530, 0.35355338
    %v534 = vadd.f32 %v532, %v204
    %v535 = vadd.f32 %v533, %v205
    %v536 = vsel %vm150, %v534, -inf
    %537 = vmax.xlane.f32.xlu0 %v536
    %v538 = vpop.xlane.xlu0 %537
    %v539 = vsel %vm150, %v535, -inf
    %540 = vmax.xlane.f32.xlu0 %v539
    %v541 = vpop.xlane.xlu0 %540
    %v542 = vsub.f32 %v534, %v538
    %v543 = vsub.f32 %v535, %v541
    %v544 = vmul.f32 %v542, 1.442695
    %v545 = vpow.pop %v544
    %v546 = vmul.f32 %v543, 1.442695
    %v547 = vpow.pop %v546
    %v548 = vsel %vm150, %v545, 0.0
    %549 = vadd.xlane.f32.xlu0 %v548
    %v550 = vpop.xlane.xlu0 %549
    %v551 = vsel %vm150, %v547, 0.0
    %552 = vadd.xlane.f32.xlu0 %v551
    %v553 = vpop.xlane.xlu0 %552
    %v554 = vrcp.pop %v550
    %v555 = vrcp.pop %v553
    %v556 = vmul.f32 %v545, %v554
    %v557 = vmul.f32 %v547, %v555
    %558 = vrot.lane.b32.xlu0 %v138, 48
    %v559 = vpop.permute.xlu0 %558
    %v562 = vsel %vm150, %v556, 0
    %564 = vmatpush.msra.mxu0 0.0
    %565 = vmatpush.msra.mxu0 0.0
    %566 = vmatpush.msra.mxu0 0.0
    %567 = vmatpush.msra.mxu0 0.0
    %568 = vmatpush.msra.mxu0 0.0
    %569 = vmatpush.msra.mxu0 0.0
    %570 = vmatpush.msra.mxu0 0.0
    %571 = vmatpush.msra.mxu0 0.0
    %572 = vmatpush.msra.mxu0 0.0
    %573 = vmatpush.msra.mxu0 0.0
    %574 = vmatpush.msra.mxu0 0.0
    %575 = vmatpush.msra.mxu0 0.0
    %576 = vmatpush.msra.mxu0 0.0
    %577 = vmatpush.msra.mxu0 0.0
    %578 = vmatpush.msra.mxu0 0.0
    %579 = vmatpush.msra.mxu0 %v559
    %580 = vmatmul.f32.gmra.mxu0 %v562
    %v581 = vpop.f32.mrf.mxu0
    %v582 = vadd.f32 0.0, %v581
    %583 = vdwg.mxu0
    %584 = vrot.lane.b32.xlu0 %v141, 48
    %v585 = vpop.permute.xlu0 %584
    %v588 = vsel %vm150, %v557, 0
    %590 = vmatpush.msra.mxu0 0.0
    %591 = vmatpush.msra.mxu0 0.0
    %592 = vmatpush.msra.mxu0 0.0
    %593 = vmatpush.msra.mxu0 0.0
    %594 = vmatpush.msra.mxu0 0.0
    %595 = vmatpush.msra.mxu0 0.0
    %596 = vmatpush.msra.mxu0 0.0
    %597 = vmatpush.msra.mxu0 0.0
    %598 = vmatpush.msra.mxu0 0.0
    %599 = vmatpush.msra.mxu0 0.0
    %600 = vmatpush.msra.mxu0 0.0
    %601 = vmatpush.msra.mxu0 0.0
    %602 = vmatpush.msra.mxu0 0.0
    %603 = vmatpush.msra.mxu0 0.0
    %604 = vmatpush.msra.mxu0 0.0
    %605 = vmatpush.msra.mxu0 %v585
    %606 = vmatmul.f32.gmra.mxu0 %v588
    %v607 = vpop.f32.mrf.mxu0
    %v608 = vadd.f32 0.0, %v607
    %609 = vdwg.mxu0
    %v611 = vsel %vm150, %v582, 0
    %v614 = vsel %vm150, %v608, 0
    %616 = vmatpush.msra.mxu0 0.0
    %617 = vmatpush.msra.mxu0 0.0
    %618 = vmatpush.msra.mxu0 0.0
    %619 = vmatpush.msra.mxu0 0.0
    %620 = vmatpush.msra.mxu0 0.0
    %621 = vmatpush.msra.mxu0 0.0
    %622 = vmatpush.msra.mxu0 0.0
    %623 = vmatpush.msra.mxu0 0.0
    %624 = vmatpush.msra.mxu0 0.0
    %625 = vmatpush.msra.mxu0 0.0
    %626 = vmatpush.msra.mxu0 0.0
    %627 = vmatpush.msra.mxu0 0.0
    %628 = vmatpush.msra.mxu0 0.0
    %629 = vmatpush.msra.mxu0 0.0
    %630 = vmatpush.msra.mxu0 0.0
    %631 = vmatpush.msra.mxu0 %v96
    %632 = vmatmul.f32.gmra.mxu0 %v611
    %v633 = vpop.f32.mrf.mxu0
    %v634 = vadd.f32 0.0, %v633
    %635 = vmatmul.f32.gmra.mxu0 %v614
    %v636 = vpop.f32.mrf.mxu0
    %v637 = vadd.f32 0.0, %v636
    %638 = vdwg.mxu0
    %v639 = vadd.f32 %v471, %v634
    %v640 = vadd.f32 %v474, %v637
    %641 = vrot.lane.b32.xlu0 %v138, 104
    %v642 = vpop.permute.xlu0 %641
    %643 = vrot.lane.b32.xlu0 %v138, 72
    %v644 = vpop.permute.xlu0 %643
    %v645 = vsel %vm150, %v642, 0
    %v647 = vsel %vm150, %v644, 0
    %649 = vmatpush.xpose.msra.mxu0 0.0
    %650 = vmatpush.xpose.msra.mxu0 0.0
    %651 = vmatpush.xpose.msra.mxu0 0.0
    %652 = vmatpush.xpose.msra.mxu0 0.0
    %653 = vmatpush.xpose.msra.mxu0 0.0
    %654 = vmatpush.xpose.msra.mxu0 0.0
    %655 = vmatpush.xpose.msra.mxu0 0.0
    %656 = vmatpush.xpose.msra.mxu0 0.0
    %657 = vmatpush.xpose.msra.mxu0 0.0
    %658 = vmatpush.xpose.msra.mxu0 0.0
    %659 = vmatpush.xpose.msra.mxu0 0.0
    %660 = vmatpush.xpose.msra.mxu0 0.0
    %661 = vmatpush.xpose.msra.mxu0 0.0
    %662 = vmatpush.xpose.msra.mxu0 0.0
    %663 = vmatpush.xpose.msra.mxu0 0.0
    %664 = vmatpush.xpose.msra.mxu0 %v647
    %665 = vmatmul.f32.gmra.mxu0 %v645
    %v666 = vpop.f32.mrf.mxu0
    %v667 = vadd.f32 0.0, %v666
    %668 = vdwg.mxu0
    %669 = vrot.lane.b32.xlu0 %v141, 104
    %v670 = vpop.permute.xlu0 %669
    %671 = vrot.lane.b32.xlu0 %v141, 72
    %v672 = vpop.permute.xlu0 %671
    %v673 = vsel %vm150, %v670, 0
    %v675 = vsel %vm150, %v672, 0
    %677 = vmatpush.xpose.msra.mxu0 0.0
    %678 = vmatpush.xpose.msra.mxu0 0.0
    %679 = vmatpush.xpose.msra.mxu0 0.0
    %680 = vmatpush.xpose.msra.mxu0 0.0
    %681 = vmatpush.xpose.msra.mxu0 0.0
    %682 = vmatpush.xpose.msra.mxu0 0.0
    %683 = vmatpush.xpose.msra.mxu0 0.0
    %684 = vmatpush.xpose.msra.mxu0 0.0
    %685 = vmatpush.xpose.msra.mxu0 0.0
    %686 = vmatpush.xpose.msra.mxu0 0.0
    %687 = vmatpush.xpose.msra.mxu0 0.0
    %688 = vmatpush.xpose.msra.mxu0 0.0
    %689 = vmatpush.xpose.msra.mxu0 0.0
    %690 = vmatpush.xpose.msra.mxu0 0.0
    %691 = vmatpush.xpose.msra.mxu0 0.0
    %692 = vmatpush.xpose.msra.mxu0 %v675
    %693 = vmatmul.f32.gmra.mxu0 %v673
    %v694 = vpop.f32.mrf.mxu0
    %v695 = vadd.f32 0.0, %v694
    %696 = vdwg.mxu0
    %v697 = vmul.f32 %v667, 0.35355338
    %v698 = vmul.f32 %v695, 0.35355338
    %v699 = vadd.f32 %v697, %v204
    %v700 = vadd.f32 %v698, %v205
    %v701 = vsel %vm150, %v699, -inf
    %702 = vmax.xlane.f32.xlu0 %v701
    %v703 = vpop.xlane.xlu0 %702
    %v704 = vsel %vm150, %v700, -inf
    %705 = vmax.xlane.f32.xlu0 %v704
    %v706 = vpop.xlane.xlu0 %705
    %v707 = vsub.f32 %v699, %v703
    %v708 = vsub.f32 %v700, %v706
    %v709 = vmul.f32 %v707, 1.442695
    %v710 = vpow.pop %v709
    %v711 = vmul.f32 %v708, 1.442695
    %v712 = vpow.pop %v711
    %v713 = vsel %vm150, %v710, 0.0
    %714 = vadd.xlane.f32.xlu0 %v713
    %v715 = vpop.xlane.xlu0 %714
    %v716 = vsel %vm150, %v712, 0.0
    %717 = vadd.xlane.f32.xlu0 %v716
    %v718 = vpop.xlane.xlu0 %717
    %v719 = vrcp.pop %v715
    %v720 = vrcp.pop %v718
    %v721 = vmul.f32 %v710, %v719
    %v722 = vmul.f32 %v712, %v720
    %723 = vrot.lane.b32.xlu0 %v138, 40
    %v724 = vpop.permute.xlu0 %723
    %v727 = vsel %vm150, %v721, 0
    %729 = vmatpush.msra.mxu0 0.0
    %730 = vmatpush.msra.mxu0 0.0
    %731 = vmatpush.msra.mxu0 0.0
    %732 = vmatpush.msra.mxu0 0.0
    %733 = vmatpush.msra.mxu0 0.0
    %734 = vmatpush.msra.mxu0 0.0
    %735 = vmatpush.msra.mxu0 0.0
    %736 = vmatpush.msra.mxu0 0.0
    %737 = vmatpush.msra.mxu0 0.0
    %738 = vmatpush.msra.mxu0 0.0
    %739 = vmatpush.msra.mxu0 0.0
    %740 = vmatpush.msra.mxu0 0.0
    %741 = vmatpush.msra.mxu0 0.0
    %742 = vmatpush.msra.mxu0 0.0
    %743 = vmatpush.msra.mxu0 0.0
    %744 = vmatpush.msra.mxu0 %v724
    %745 = vmatmul.f32.gmra.mxu0 %v727
    %v746 = vpop.f32.mrf.mxu0
    %v747 = vadd.f32 0.0, %v746
    %748 = vdwg.mxu0
    %749 = vrot.lane.b32.xlu0 %v141, 40
    %v750 = vpop.permute.xlu0 %749
    %v753 = vsel %vm150, %v722, 0
    %755 = vmatpush.msra.mxu0 0.0
    %756 = vmatpush.msra.mxu0 0.0
    %757 = vmatpush.msra.mxu0 0.0
    %758 = vmatpush.msra.mxu0 0.0
    %759 = vmatpush.msra.mxu0 0.0
    %760 = vmatpush.msra.mxu0 0.0
    %761 = vmatpush.msra.mxu0 0.0
    %762 = vmatpush.msra.mxu0 0.0
    %763 = vmatpush.msra.mxu0 0.0
    %764 = vmatpush.msra.mxu0 0.0
    %765 = vmatpush.msra.mxu0 0.0
    %766 = vmatpush.msra.mxu0 0.0
    %767 = vmatpush.msra.mxu0 0.0
    %768 = vmatpush.msra.mxu0 0.0
    %769 = vmatpush.msra.mxu0 0.0
    %770 = vmatpush.msra.mxu0 %v750
    %771 = vmatmul.f32.gmra.mxu0 %v753
    %v772 = vpop.f32.mrf.mxu0
    %v773 = vadd.f32 0.0, %v772
    %774 = vdwg.mxu0
    %v776 = vsel %vm150, %v747, 0
    %v779 = vsel %vm150, %v773, 0
    %781 = vmatpush.msra.mxu0 0.0
    %782 = vmatpush.msra.mxu0 0.0
    %783 = vmatpush.msra.mxu0 0.0
    %784 = vmatpush.msra.mxu0 0.0
    %785 = vmatpush.msra.mxu0 0.0
    %786 = vmatpush.msra.mxu0 0.0
    %787 = vmatpush.msra.mxu0 0.0
    %788 = vmatpush.msra.mxu0 0.0
    %789 = vmatpush.msra.mxu0 0.0
    %790 = vmatpush.msra.mxu0 0.0
    %791 = vmatpush.msra.mxu0 0.0
    %792 = vmatpush.msra.mxu0 0.0
    %793 = vmatpush.msra.mxu0 0.0
    %794 = vmatpush.msra.mxu0 0.0
    %795 = vmatpush.msra.mxu0 0.0
    %796 = vmatpush.msra.mxu0 %v97
    %797 = vmatmul.f32.gmra.mxu0 %v776
    %v798 = vpop.f32.mrf.mxu0
    %v799 = vadd.f32 0.0, %v798
    %800 = vmatmul.f32.gmra.mxu0 %v779
    %v801 = vpop.f32.mrf.mxu0
    %v802 = vadd.f32 0.0, %v801
    %803 = vdwg.mxu0
    %v804 = vadd.f32 %v639, %v799
    %v805 = vadd.f32 %v640, %v802
    %v806 = vperm.slane %v111, 0
    %v807 = vadd.f32 %v804, %v806
    %v808 = vadd.f32 %v805, %v806
    %v809 = vadd.f32 %v807, %v87
    %v810 = vadd.f32 %v808, %v88
    %v811 = vsel %vm113, %v809, 0.0
    %812 = vadd.xlane.f32.xlu0 %v811
    %v813 = vpop.xlane.xlu0 %812
    %v814 = vsel %vm113, %v810, 0.0
    %815 = vadd.xlane.f32.xlu0 %v814
    %v816 = vpop.xlane.xlu0 %815
    %v817 = vrcp.pop 32.0
    %v818 = vmul.f32 32.0, %v817
    %v819 = vsub.f32 1.0, %v818
    %v820 = vmul.f32 %v817, %v819
    %v821 = vadd.f32 %v817, %v820
    %vm822 = vweird.f32 %v817
    %v823 = vsel %vm822, %v817, %v821
    %v824 = vmul.f32 %v813, %v823
    %v825 = vmul.f32 %v816, %v823
    %v826 = vsub.f32 %v809, %v824
    %v827 = vsub.f32 %v810, %v825
    %v828 = vmul.f32 %v826, %v826
    %v829 = vmul.f32 %v827, %v827
    %v830 = vsel %vm113, %v828, 0.0
    %831 = vadd.xlane.f32.xlu0 %v830
    %v832 = vpop.xlane.xlu0 %831
    %v833 = vsel %vm113, %v829, 0.0
    %834 = vadd.xlane.f32.xlu0 %v833
    %v835 = vpop.xlane.xlu0 %834
    %v836 = vmul.f32 %v832, %v823
    %v837 = vmul.f32 %v835, %v823
    %v838 = vadd.f32 %v836, 1e-05
    %v839 = vadd.f32 %v837, 1e-05
    %v840 = vrsqrt.pop %v838
    %v841 = vmul.f32 %v840, %v838
    %v842 = vmul.f32 %v841, %v840
    %v843 = vmul.f32 0.5, %v842
    %v844 = vsub.f32 1.5, %v843
    %v845 = vmul.f32 %v840, %v844
    %vm846 = vweird.f32 %v838
    %vm847 = vweird.f32 %v840
    %vm848 = vmor %vm846, %vm847
    %v849 = vsel %vm848, %v840, %v845
    %v850 = vrsqrt.pop %v839
    %v851 = vmul.f32 %v850, %v839
    %v852 = vmul.f32 %v851, %v850
    %v853 = vmul.f32 0.5, %v852
    %v854 = vsub.f32 1.5, %v853
    %v855 = vmul.f32 %v850, %v854
    %vm856 = vweird.f32 %v839
    %vm857 = vweird.f32 %v850
    %vm858 = vmor %vm856, %vm857
    %v859 = vsel %vm858, %v850, %v855
    %v860 = vmul.f32 %v826, %v849
    %v861 = vmul.f32 %v827, %v859
    %v862 = vperm.slane %v111, 1
    %v863 = vmul.f32 %v860, %v862
    %v864 = vmul.f32 %v861, %v862
    %v865 = vperm.slane %v111, 2
    %v866 = vadd.f32 %v863, %v865
    %v867 = vadd.f32 %v864, %v865
    %v868 = vperm.slane %v110, 1
    %v870 = vsel %vm113, %v866, 0
    %v873 = vsel %vm113, %v867, 0
    %875 = vmatpush.msra.mxu0 0.0
    %876 = vmatpush.msra.mxu0 0.0
    %877 = vmatpush.msra.mxu0 0.0
    %878 = vmatpush.msra.mxu0 0.0
    %879 = vmatpush.msra.mxu0 0.0
    %880 = vmatpush.msra.mxu0 0.0
    %881 = vmatpush.msra.mxu0 0.0
    %882 = vmatpush.msra.mxu0 0.0
    %883 = vmatpush.msra.mxu0 0.0
    %884 = vmatpush.msra.mxu0 0.0
    %885 = vmatpush.msra.mxu0 0.0
    %886 = vmatpush.msra.mxu0 0.0
    %887 = vmatpush.msra.mxu0 %v101
    %888 = vmatpush.msra.mxu0 %v100
    %889 = vmatpush.msra.mxu0 %v99
    %890 = vmatpush.msra.mxu0 %v98
    %891 = vmatmul.f32.gmra.mxu0 %v870
    %v892 = vpop.f32.mrf.mxu0
    %v893 = vadd.f32 %v868, %v892
    %894 = vmatmul.f32.gmra.mxu0 %v873
    %v895 = vpop.f32.mrf.mxu0
    %v896 = vadd.f32 %v868, %v895
    %897 = vdwg.mxu0
    %v898 = vmul.f32 %v893, 0.5
    %v899 = vmul.f32 %v896, 0.5
    %v900 = vmul.f32 %v893, 0.70710677
    %v901 = vmul.f32 %v896, 0.70710677
    %v902 = vmul.f32 %v900, %v900
    %v903 = vmin.f32 16.0, %v902
    %v904 = vmul.f32 %v903, 2.1237322e-06
    %v905 = vadd.f32 %v904, 0.00028619796
    %v906 = vmul.f32 %v903, %v905
    %v907 = vadd.f32 %v906, 0.0036580483
    %v908 = vmul.f32 %v903, %v907
    %v909 = vadd.f32 %v908, 0.05243302
    %v910 = vmul.f32 %v903, %v909
    %v911 = vadd.f32 %v910, 0.18741608
    %v912 = vmul.f32 %v903, %v911
    %v913 = vadd.f32 %v912, 1.1283791
    %v914 = vmul.f32 %v900, %v913
    %v915 = vmul.f32 %v903, 3.8918573e-05
    %v916 = vadd.f32 %v915, 0.001143296
    %v917 = vmul.f32 %v903, %v916
    %v918 = vadd.f32 %v917, 0.014752088
    %v919 = vmul.f32 %v903, %v918
    %v920 = vadd.f32 %v919, 0.112945676
    %v921 = vmul.f32 %v903, %v920
    %v922 = vadd.f32 %v921, 0.4994258
    %v923 = vmul.f32 %v903, %v922
    %v924 = vadd.f32 %v923, 1.0
    %v925 = vrcp.pop %v924
    %v926 = vmul.f32 %v924, %v925
    %v927 = vsub.f32 1.0, %v926
    %v928 = vmul.f32 %v925, %v927
    %v929 = vadd.f32 %v925, %v928
    %vm930 = vweird.f32 %v924
    %vm931 = vweird.f32 %v925
    %vm932 = vmor %vm930, %vm931
    %v933 = vsel %vm932, %v925, %v929
    %v934 = vand.u32 2147483647, %v924
    %vm935 = vcmp.eq.f32.partialorder %v934, 8.507059e+37
    %v936 = vand.u32 %v924, 2147483648
    %v937 = vor.u32 1.1754944e-38, %v936
    %v938 = vsel %vm935, %v937, %v933
    %v939 = vmul.f32 %v914, %v938
    %v940 = vmin.f32 %v939, 1.0
    %v941 = vmax.f32 %v940, -1.0
    %v942 = vmul.f32 %v901, %v901
    %v943 = vmin.f32 16.0, %v942
    %v944 = vmul.f32 %v943, 2.1237322e-06
    %v945 = vadd.f32 %v944, 0.00028619796
    %v946 = vmul.f32 %v943, %v945
    %v947 = vadd.f32 %v946, 0.0036580483
    %v948 = vmul.f32 %v943, %v947
    %v949 = vadd.f32 %v948, 0.05243302
    %v950 = vmul.f32 %v943, %v949
    %v951 = vadd.f32 %v950, 0.18741608
    %v952 = vmul.f32 %v943, %v951
    %v953 = vadd.f32 %v952, 1.1283791
    %v954 = vmul.f32 %v901, %v953
    %v955 = vmul.f32 %v943, 3.8918573e-05
    %v956 = vadd.f32 %v955, 0.001143296
    %v957 = vmul.f32 %v943, %v956
    %v958 = vadd.f32 %v957, 0.014752088
    %v959 = vmul.f32 %v943, %v958
    %v960 = vadd.f32 %v959, 0.112945676
    %v961 = vmul.f32 %v943, %v960
    %v962 = vadd.f32 %v961, 0.4994258
    %v963 = vmul.f32 %v943, %v962
    %v964 = vadd.f32 %v963, 1.0
    %v965 = vrcp.pop %v964
    %v966 = vmul.f32 %v964, %v965
    %v967 = vsub.f32 1.0, %v966
    %v968 = vmul.f32 %v965, %v967
    %v969 = vadd.f32 %v965, %v968
    %vm970 = vweird.f32 %v964
    %vm971 = vweird.f32 %v965
    %vm972 = vmor %vm970, %vm971
    %v973 = vsel %vm972, %v965, %v969
    %v974 = vand.u32 2147483647, %v964
    %vm975 = vcmp.eq.f32.partialorder %v974, 8.507059e+37
    %v976 = vand.u32 %v964, 2147483648
    %v977 = vor.u32 1.1754944e-38, %v976
    %v978 = vsel %vm975, %v977, %v973
    %v979 = vmul.f32 %v954, %v978
    %v980 = vmin.f32 %v979, 1.0
    %v981 = vmax.f32 %v980, -1.0
    %v982 = vadd.f32 %v941, 1.0
    %v983 = vadd.f32 %v981, 1.0
    %v984 = vmul.f32 %v898, %v982
    %v985 = vmul.f32 %v899, %v983
    %v986 = vperm.slane %v111, 3
    %vm987 = vcmask 523264
    %v989 = vsel %vm987, %v984, 0
    %v992 = vsel %vm987, %v985, 0
    %994 = vmatpush.msra.mxu0 0.0
    %995 = vmatpush.msra.mxu0 0.0
    %996 = vmatpush.msra.mxu0 0.0
    %997 = vmatpush.msra.mxu0 0.0
    %998 = vmatpush.msra.mxu0 0.0
    %999 = vmatpush.msra.mxu0 0.0
    %1000 = vmatpush.msra.mxu0 0.0
    %1001 = vmatpush.msra.mxu0 0.0
    %1002 = vmatpush.msra.mxu0 %v109
    %1003 = vmatpush.msra.mxu0 %v108
    %1004 = vmatpush.msra.mxu0 %v107
    %1005 = vmatpush.msra.mxu0 %v106
    %1006 = vmatpush.msra.mxu0 %v105
    %1007 = vmatpush.msra.mxu0 %v104
    %1008 = vmatpush.msra.mxu0 %v103
    %1009 = vmatpush.msra.mxu0 %v102
    %1010 = vmatmul.f32.gmra.mxu0 %v989
    %v1011 = vpop.f32.mrf.mxu0
    %v1012 = vadd.f32 %v986, %v1011
    %1013 = vmatmul.f32.gmra.mxu0 %v992
    %v1014 = vpop.f32.mrf.mxu0
    %v1015 = vadd.f32 %v986, %v1014
    %1016 = vdwg.mxu0
    %v1017 = vadd.f32 %v866, %v1012
    %v1018 = vadd.f32 %v867, %v1015
    %v1019 = vsel %vm113, %v1017, 0.0
    %1020 = vadd.xlane.f32.xlu0 %v1019
    %v1021 = vpop.xlane.xlu0 %1020
    %v1022 = vsel %vm113, %v1018, 0.0
    %1023 = vadd.xlane.f32.xlu0 %v1022
    %v1024 = vpop.xlane.xlu0 %1023
    %v1025 = vmul.f32 %v1021, %v823
    %v1026 = vmul.f32 %v1024, %v823
    %v1027 = vsub.f32 %v1017, %v1025
    %v1028 = vsub.f32 %v1018, %v1026
    %v1029 = vmul.f32 %v1027, %v1027
    %v1030 = vmul.f32 %v1028, %v1028
    %v1031 = vsel %vm113, %v1029, 0.0
    %1032 = vadd.xlane.f32.xlu0 %v1031
    %v1033 = vpop.xlane.xlu0 %1032
    %v1034 = vsel %vm113, %v1030, 0.0
    %1035 = vadd.xlane.f32.xlu0 %v1034
    %v1036 = vpop.xlane.xlu0 %1035
    %v1037 = vmul.f32 %v1033, %v823
    %v1038 = vmul.f32 %v1036, %v823
    %v1039 = vadd.f32 %v1037, 1e-05
    %v1040 = vadd.f32 %v1038, 1e-05
    %v1041 = vrsqrt.pop %v1039
    %v1042 = vmul.f32 %v1041, %v1039
    %v1043 = vmul.f32 %v1042, %v1041
    %v1044 = vmul.f32 0.5, %v1043
    %v1045 = vsub.f32 1.5, %v1044
    %v1046 = vmul.f32 %v1041, %v1045
    %vm1047 = vweird.f32 %v1039
    %vm1048 = vweird.f32 %v1041
    %vm1049 = vmor %vm1047, %vm1048
    %v1050 = vsel %vm1049, %v1041, %v1046
    %v1051 = vrsqrt.pop %v1040
    %v1052 = vmul.f32 %v1051, %v1040
    %v1053 = vmul.f32 %v1052, %v1051
    %v1054 = vmul.f32 0.5, %v1053
    %v1055 = vsub.f32 1.5, %v1054
    %v1056 = vmul.f32 %v1051, %v1055
    %vm1057 = vweird.f32 %v1040
    %vm1058 = vweird.f32 %v1051
    %vm1059 = vmor %vm1057, %vm1058
    %v1060 = vsel %vm1059, %v1051, %v1056
    %v1061 = vmul.f32 %v1027, %v1050
    %v1062 = vmul.f32 %v1028, %v1060
    %v1063 = vperm.slane %v111, 4
    %v1064 = vmul.f32 %v1061, %v1063
    %v1065 = vmul.f32 %v1062, %v1063
    %v1066 = vperm.slane %v111, 5
    %v1067 = vadd.f32 %v1064, %v1066
    %v1068 = vadd.f32 %v1065, %v1066
    %1069 = vst.msk [vmem:[#allocation10] sm:$0xff] %vm113, %v1067
    %1070 = vst.msk [vmem:[#allocation10 + $0x8] sm:$0xff] %vm113, %v1068
    // Predicated region
    $region50: #{transformer_layer.1} parent=1 // pred_check
      _
    $region51: #{transformer_layer.1} parent=1 // pred_check_branch
      %1072 = sbr.rel (0) target = $region53
    $region52: #{transformer_layer.1} parent=1 // pred_region
      %1074 = vsyncadd [#allocation4], 0
      %s1075 = sshll.u32 [#allocation10], 4
      %s1076 = int_to_ptr.vmem [resolvable:$true] %s1075
      %s1077 = sshll.u32 %s8, 4
      %s1078 = int_to_ptr.hbm [resolvable:$true] %s1077
      %1083 = dma.vmem_to_hbm [thread:$0]  %s1076, 256, %s1078, [#allocation4], 128, 128, 8
    $region53: #{transformer_layer.1} parent=1 // pred_fallthru
      _
    // Predicated region
    $region54: #{transformer_layer.1} parent=1 // pred_check
      _
    $region55: #{transformer_layer.1} parent=1 // pred_check_branch
      %1085 = sbr.rel (0) target = $region57
    $region56: #{transformer_layer.1} parent=1 // pred_region
      %1087 = dma.done [#allocation4], 256
    $region57: #{transformer_layer.1} parent=1 // pred_fallthru
      _
    %1088 = vsyncpa [#allocation3], 1
    %1089 = vsyncpa [#allocation6], 1
    %1090 = vsyncpa [#allocation9], 1
    %1091 = vsyncpa [#allocation4], 1

</llo_original>
